<compile_context>
chip_gen: v5e
topology: v5e:2x2
jax: 0.10.0
libtpu: 0.0.40
codegen_flags: <defaults>
</compile_context>

<pallas_src>
import functools

import jax
import jax.numpy as jnp
from jax.experimental import pallas as pl
from jax.experimental.pallas import tpu as pltpu


# ----------------------------------------------------------------------------
# Kernel
# ----------------------------------------------------------------------------
def _attn_kernel(x_ref,       # VMEM [Bt, S, H]  (input dtype: f32 or bf16)
                 w_att_ref,   # VMEM [H, A]      (pre-transposed, x dtype)
                 bw_ref,      # VMEM [2, A] f32  (row 0 = b_att, row 1 = w_ctx)
                 len_ref,     # VMEM [Bt, 1]     int32
                 ctx_ref,     # VMEM out [Bt, H]
                 wts_ref,     # VMEM out [Bt, S] f32
                 *, approx_recip):
    Bt, S, H = x_ref.shape
    A = w_att_ref.shape[1]

    # attention_linear + tanh:  [Bt*S, H] @ [H, A] on the MXU, f32 accumulate.
    x2 = x_ref[...].reshape(Bt * S, H)
    hidden = jnp.tanh(
        jnp.dot(x2, w_att_ref[...], preferred_element_type=jnp.float32)
        + bw_ref[0:1, :]
    )                                                         # [Bt*S, A] f32

    # context_vector scores: VPU multiply with the broadcast w_ctx row +
    # lane-axis reduction (avoids an N=1 MXU matmul); result is lane-dense.
    w_ctx_row = bw_ref[1:2, :].reshape(1, 1, A)
    scores = jnp.sum(hidden.reshape(Bt, S, A) * w_ctx_row, axis=-1)  # [Bt, S]

    # Optional length masking (lengths == S means "no mask").
    length = len_ref[...]                                     # [Bt, 1] int32
    seq_idx = jax.lax.broadcasted_iota(jnp.int32, (Bt, S), 1)
    scores = jnp.where(seq_idx < length, scores, -jnp.inf)

    # Softmax over the sequence (lane) axis.
    m = jnp.max(scores, axis=-1, keepdims=True)               # [Bt, 1]
    e = jnp.exp(scores - m)                                   # [Bt, S]
    denom = jnp.sum(e, axis=-1, keepdims=True)                # [Bt, 1]
    weights = e * pl.reciprocal(denom, approx=approx_recip)   # [Bt, S] f32

    # context = sum_s weights[:, s] * x[:, s, :]  as a batched [1,S]@[S,H]
    # MXU matmul. x is re-read from VMEM here (it already resides there) so
    # the [Bt,S,H] value is not kept live across tanh/softmax.
    xv = x_ref[...]
    w3 = weights.astype(xv.dtype).reshape(Bt, 1, S)
    context = jnp.einsum("bqs,bsh->bqh", w3, xv,
                         preferred_element_type=jnp.float32)  # [Bt, 1, H]

    ctx_ref[...] = context.reshape(Bt, H).astype(ctx_ref.dtype)
    wts_ref[...] = weights.astype(wts_ref.dtype)


# ----------------------------------------------------------------------------
# Block-size selection / VMEM accounting
# ----------------------------------------------------------------------------
def _block_vmem_bytes(bt, S, H, A, x_itemsize):
    """Per-grid-step VMEM footprint estimate (incl. double buffers and the
    f32 hidden / softmax intermediates)."""
    return (2 * bt * S * H * x_itemsize          # x block, double-buffered DMA
            + bt * S * H * x_itemsize            # re-loaded x value in-kernel
            + 2 * bt * H * 4 + 2 * bt * S * 4    # output blocks, double-buffered
            + 2 * H * A * x_itemsize             # w_att (double-buffered)
            + 2 * 2 * A * 4                      # folded bias / w_ctx
            + 2 * bt * 4                         # lengths block
            + bt * S * A * 4                     # tanh(hidden) f32 slab
            + 3 * bt * S * 4)                    # scores / exp / weights f32


def _pick_block_b(B, S, H, A, x_itemsize, target_rows, vmem_budget):
    """Largest divisor of B that (a) is a multiple of 8 or equals B (so the
    (bt, H)/(bt, S) output blocks obey the (8,128) layout rule), (b) keeps
    Bt*S near target_rows, (c) leaves >= 2 batch blocks when B >= 16 (v7x
    megacore), and (d) fits the VMEM budget. Never requires padding."""
    cap = max(1, target_rows // max(S, 1))
    if B >= 16:
        cap = min(cap, B // 2)      # guarantee >= 2 grid steps on v7x (2 TCs)
    cap = min(cap, B)

    divs = [d for d in range(1, B + 1)
            if B % d == 0 and (d % 8 == 0 or d == B)]
    ok = [d for d in divs if d <= cap]
    if ok:
        fit = [d for d in ok
               if _block_vmem_bytes(d, S, H, A, x_itemsize) <= vmem_budget]
        return max(fit) if fit else min(ok)
    # No aligned divisor below the cap: fall back to the smallest aligned
    # divisor (worst case the whole batch as one block — always layout-valid).
    # TODO(synk): for pathological B with huge S this single block may exceed
    # the VMEM budget; split the sequence dim in that case.
    return min(divs)


# ----------------------------------------------------------------------------
# Wrapper
# ----------------------------------------------------------------------------
@functools.partial(
    jax.jit,
    static_argnames=("block_b", "target_rows", "approx_recip", "x_buffers",
                     "interpret"))
def lstm_attention(lstm_outputs, w_att, b_att, w_ctx, lengths=None, *,
                   block_b=None, target_rows=1024, approx_recip=True,
                   x_buffers=2, interpret=False):
    """lstm_outputs: [B, S, H]; w_att: [A, H]; b_att: [A]; w_ctx: [1, A];
    lengths: int32 [B] or None. Returns (context [B, H], weights [B, S]).

    Note: no dtype cast of lstm_outputs is done here — cast to bf16 at the
    producer if you want the bandwidth / MXU-cadence win.
    """
    B, S, H = lstm_outputs.shape
    A = w_att.shape[0]
    out_dtype = lstm_outputs.dtype
    x_itemsize = jnp.dtype(lstm_outputs.dtype).itemsize

    if lengths is None:
        lengths = jnp.full((B,), S, dtype=jnp.int32)
    lengths = lengths.astype(jnp.int32)

    # --- batch block size (always a divisor of B -> no padding / no pad copy)
    vmem_budget = 40 * 1024 * 1024          # safe on v7x's 64 MiB physical VMEM
    if block_b is None:
        bt = _pick_block_b(B, S, H, A, x_itemsize, target_rows, vmem_budget)
    else:
        bt = block_b
    n_blk = B // bt

    # --- one-time parameter layout prep (tiny, outside the kernel) ----------
    w_att_t = jnp.transpose(w_att).astype(lstm_outputs.dtype)      # [H, A]
    bias_ctx = jnp.stack(
        [b_att.astype(jnp.float32), w_ctx.reshape(A).astype(jnp.float32)],
        axis=0)                                                    # [2, A]
    lens2 = lengths.reshape(B, 1)

    # --- VMEM limit: estimate + headroom, capped below v7x's 64 MiB ---------
    est = _block_vmem_bytes(bt, S, H, A, x_itemsize)
    vmem_limit = int(min(max(est + (8 << 20), 32 << 20), 44 << 20))

    x_spec_kwargs = {}
    if x_buffers != 2:
        # e.g. x_buffers=3 on v5e if profiling shows exposed DMA on x.
        x_spec_kwargs["pipeline_mode"] = pl.Buffered(x_buffers)

    kernel = functools.partial(_attn_kernel, approx_recip=approx_recip)

    ctx, wts = pl.pallas_call(
        kernel,
        grid=(n_blk,),
        in_specs=[
            pl.BlockSpec((bt, S, H), lambda b: (b, 0, 0), **x_spec_kwargs),
            pl.BlockSpec((H, A), lambda b: (0, 0)),
            pl.BlockSpec((2, A), lambda b: (0, 0)),
            pl.BlockSpec((bt, 1), lambda b: (b, 0)),
        ],
        out_specs=[
            pl.BlockSpec((bt, H), lambda b: (b, 0)),
            pl.BlockSpec((bt, S), lambda b: (b, 0)),
        ],
        out_shape=(
            jax.ShapeDtypeStruct((B, H), out_dtype),
            jax.ShapeDtypeStruct((B, S), jnp.float32),
        ),
        compiler_params=pltpu.CompilerParams(
            dimension_semantics=("parallel",),
            vmem_limit_bytes=vmem_limit),
        interpret=interpret,
    )(lstm_outputs, w_att_t, bias_ctx, lens2)

    return ctx, wts


# ----------------------------------------------------------------------------
# Pure-JAX reference + self-test
# ----------------------------------------------------------------------------
def _reference(lstm_outputs, w_att, b_att, w_ctx, lengths):
    B, S, H = lstm_outputs.shape
    hidden = jnp.tanh(jnp.einsum("bsh,ah->bsa", lstm_outputs, w_att) + b_att)
    scores = jnp.einsum("bsa,a->bs", hidden, w_ctx[0])
    mask = jnp.arange(S)[None, :] < lengths[:, None]
    scores = jnp.where(mask, scores, -jnp.inf)
    weights = jax.nn.softmax(scores, axis=1)
    context = jnp.sum(weights[..., None] * lstm_outputs, axis=1)
    return context, weights


def _make_inputs(key, B, S, H, A):
    k_x, k_w1, k_b1, k_w2 = jax.random.split(key, 4)
    x = jax.random.normal(k_x, (B, S, H), dtype=jnp.float32)
    # nn.Linear-style init: U(-1/sqrt(fan_in), 1/sqrt(fan_in))
    bound1 = 1.0 / (H ** 0.5)
    w_att = jax.random.uniform(k_w1, (A, H), jnp.float32, -bound1, bound1)
    b_att = jax.random.uniform(k_b1, (A,), jnp.float32, -bound1, bound1)
    bound2 = 1.0 / (A ** 0.5)
    w_ctx = jax.random.uniform(k_w2, (1, A), jnp.float32, -bound2, bound2)
    return x, w_att, b_att, w_ctx


if __name__ == "__main__":
    key = jax.random.PRNGKey(0)
    k1, k2 = jax.random.split(key)

    # --- case 1: small shapes consistent with the module (A = 128 default) --
    B, S, H, A = 2, 8, 32, 128
    x, w_att, b_att, w_ctx = _make_inputs(k1, B, S, H, A)
    lengths = jnp.array([5, S], dtype=jnp.int32)      # exercises the mask path

    # exact-reciprocal path: strict 1e-5 check against the reference
    ctx, wts = lstm_attention(x, w_att, b_att, w_ctx, lengths,
                              approx_recip=False)
    jax.block_until_ready((ctx, wts))
    ctx_ref, wts_ref = _reference(x, w_att, b_att, w_ctx, lengths)
    assert ctx.shape == (B, H) and wts.shape == (B, S)
    assert jnp.allclose(ctx, ctx_ref, atol=1e-5, rtol=1e-5), "context mismatch"
    assert jnp.allclose(wts, wts_ref, atol=1e-5, rtol=1e-5), "weights mismatch"

    # default (approx EUP reciprocal) path: looser tolerance
    ctx_a, wts_a = lstm_attention(x, w_att, b_att, w_ctx, lengths)
    jax.block_until_ready((ctx_a, wts_a))
    assert jnp.allclose(ctx_a, ctx_ref, atol=2e-3, rtol=2e-3), "approx ctx"
    assert jnp.allclose(wts_a, wts_ref, atol=2e-3, rtol=2e-3), "approx wts"

    # --- case 2: multi-block grid (B=16 -> bt=8, 2 batch blocks) ------------
    B2, S2, H2 = 16, 16, 64
    x2, w_att2, b_att2, w_ctx2 = _make_inputs(k2, B2, S2, H2, A)
    lengths2 = (jnp.arange(B2, dtype=jnp.int32) % S2) + 1
    ctx2, wts2 = lstm_attention(x2, w_att2, b_att2, w_ctx2, lengths2,
                                approx_recip=False)
    jax.block_until_ready((ctx2, wts2))
    ctx2_ref, wts2_ref = _reference(x2, w_att2, b_att2, w_ctx2, lengths2)
    assert jnp.allclose(ctx2, ctx2_ref, atol=1e-5, rtol=1e-5), "ctx2 mismatch"
    assert jnp.allclose(wts2, wts2_ref, atol=1e-5, rtol=1e-5), "wts2 mismatch"

    # TODO(synk): zero-length rows produce NaN weights (matches the torch /
    # jax reference softmax over an all -inf row); clamp upstream if needed.

    print("KERNEL_OK")
</pallas_src>

<mosaic_0001>
module attributes {stable_mosaic.version = 11 : i64} {
  func.func @_attn_kernel(%arg0: i32, %arg1: memref<2x8x32xf32, #tpu.memory_space<vmem>>, %arg2: memref<32x128xf32, #tpu.memory_space<vmem>>, %arg3: memref<2x128xf32, #tpu.memory_space<vmem>>, %arg4: memref<2x1xi32, #tpu.memory_space<vmem>>, %arg5: memref<2x32xf32, #tpu.memory_space<vmem>>, %arg6: memref<2x8xf32, #tpu.memory_space<vmem>>) attributes {dimension_semantics = [#tpu.dimension_semantics<parallel>], iteration_bounds = array<i64: 1>, scalar_prefetch = 0 : i64, scratch_operands = 0 : i64, tpu.core_type = #tpu.core_type<tc>, window_params = [{transform_indices = @transform_0, window_bounds = array<i64: 2, 8, 32>}, {pipeline_mode = #tpu.pipeline_mode<synchronous>, transform_indices = @transform_1, window_bounds = array<i64: 32, 128>}, {pipeline_mode = #tpu.pipeline_mode<synchronous>, transform_indices = @transform_2, window_bounds = array<i64: 2, 128>}, {transform_indices = @transform_3, window_bounds = array<i64: 2, 1>}, {transform_indices = @transform_4, window_bounds = array<i64: 2, 32>}, {transform_indices = @transform_5, window_bounds = array<i64: 2, 8>}]} {
    %c0 = arith.constant 0 : index
    %c0_0 = arith.constant 0 : index
    %c0_1 = arith.constant 0 : index
    %0 = vector.load %arg1[%c0, %c0_0, %c0_1] : memref<2x8x32xf32, #tpu.memory_space<vmem>>, vector<2x8x32xf32>
    %1 = vector.shape_cast %0 : vector<2x8x32xf32> to vector<16x32xf32>
    %c0_2 = arith.constant 0 : index
    %c0_3 = arith.constant 0 : index
    %2 = vector.load %arg2[%c0_2, %c0_3] : memref<32x128xf32, #tpu.memory_space<vmem>>, vector<32x128xf32>
    %cst = arith.constant dense<0.000000e+00> : vector<16x128xf32>
    %3 = tpu.matmul %1, %2, %cst {dimension_numbers = #tpu.dot_dimension_numbers<[1], [0], [0], [1], [0, 0, 1, 1], [], []>} : vector<16x32xf32>, vector<32x128xf32>, vector<16x128xf32> -> vector<16x128xf32>
    %c0_4 = arith.constant 0 : index
    %c0_5 = arith.constant 0 : index
    %4 = vector.load %arg3[%c0_4, %c0_5] : memref<2x128xf32, #tpu.memory_space<vmem>>, vector<1x128xf32>
    %5 = vector.broadcast %4 : vector<1x128xf32> to vector<16x128xf32>
    %6 = arith.addf %3, %5 : vector<16x128xf32>
    %7 = math.tanh %6 : vector<16x128xf32>
    %c1 = arith.constant 1 : index
    %c0_6 = arith.constant 0 : index
    %8 = vector.load %arg3[%c1, %c0_6] : memref<2x128xf32, #tpu.memory_space<vmem>>, vector<1x128xf32>
    %9 = vector.shape_cast %8 : vector<1x128xf32> to vector<1x1x128xf32>
    %10 = vector.shape_cast %7 : vector<16x128xf32> to vector<2x8x128xf32>
    %11 = vector.broadcast %9 : vector<1x1x128xf32> to vector<2x8x128xf32>
    %12 = arith.mulf %10, %11 : vector<2x8x128xf32>
    %cst_7 = arith.constant dense<0.000000e+00> : vector<2x8xf32>
    %13 = vector.multi_reduction <add>, %12, %cst_7 [2] : vector<2x8x128xf32> to vector<2x8xf32>
    %c0_8 = arith.constant 0 : index
    %c0_9 = arith.constant 0 : index
    %14 = vector.load %arg4[%c0_8, %c0_9] : memref<2x1xi32, #tpu.memory_space<vmem>>, vector<2x1xi32>
    %15 = tpu.iota {dimensions = array<i32: 1>} : vector<2x8xi32>
    %16 = vector.broadcast %14 : vector<2x1xi32> to vector<2x8xi32>
    %17 = arith.cmpi slt, %15, %16 : vector<2x8xi32>
    %cst_10 = arith.constant 0xFF800000 : f32
    %18 = vector.broadcast %cst_10 : f32 to vector<2x8xf32>
    %19 = arith.select %17, %13, %18 : vector<2x8xi1>, vector<2x8xf32>
    %cst_11 = arith.constant dense<0xFF800000> : vector<2xf32>
    %20 = vector.multi_reduction <maximumf>, %19, %cst_11 [1] : vector<2x8xf32> to vector<2xf32>
    %21 = vector.shape_cast %20 : vector<2xf32> to vector<2x1xf32>
    %22 = vector.broadcast %21 : vector<2x1xf32> to vector<2x8xf32>
    %23 = arith.subf %19, %22 : vector<2x8xf32>
    %24 = math.exp %23 : vector<2x8xf32>
    %cst_12 = arith.constant dense<0.000000e+00> : vector<2xf32>
    %25 = vector.multi_reduction <add>, %24, %cst_12 [1] : vector<2x8xf32> to vector<2xf32>
    %26 = vector.shape_cast %25 : vector<2xf32> to vector<2x1xf32>
    %27 = tpu.reciprocal %26 : vector<2x1xf32> -> vector<2x1xf32>
    %28 = vector.broadcast %27 : vector<2x1xf32> to vector<2x8xf32>
    %29 = arith.mulf %24, %28 : vector<2x8xf32>
    %c0_13 = arith.constant 0 : index
    %c0_14 = arith.constant 0 : index
    %c0_15 = arith.constant 0 : index
    %30 = vector.load %arg1[%c0_13, %c0_14, %c0_15] : memref<2x8x32xf32, #tpu.memory_space<vmem>>, vector<2x8x32xf32>
    %31 = vector.shape_cast %29 : vector<2x8xf32> to vector<2x1x8xf32>
    "tpu.trace_start"() <{level = 10 : i32, message = "bqs,bsh->bqh"}> : () -> ()
    %cst_16 = arith.constant dense<0.000000e+00> : vector<2x1x32xf32>
    %32 = tpu.matmul %31, %30, %cst_16 {dimension_numbers = #tpu.dot_dimension_numbers<[2], [1], [1], [2], [0, 0, 0, 1, 1, 2], [0], [0]>} : vector<2x1x8xf32>, vector<2x8x32xf32>, vector<2x1x32xf32> -> vector<2x1x32xf32>
    "tpu.trace_stop"() : () -> ()
    %33 = vector.shape_cast %32 : vector<2x1x32xf32> to vector<2x32xf32>
    %c0_17 = arith.constant 0 : index
    %c0_18 = arith.constant 0 : index
    %34 = vector.load %arg5[%c0_17, %c0_18] : memref<2x32xf32, #tpu.memory_space<vmem>>, vector<2x32xf32>
    tpu.vector_store %arg5[%c0_17, %c0_18], %33 {strides = array<i32>} : memref<2x32xf32, #tpu.memory_space<vmem>>, vector<2x32xf32>,
    %c0_19 = arith.constant 0 : index
    %c0_20 = arith.constant 0 : index
    %35 = vector.load %arg6[%c0_19, %c0_20] : memref<2x8xf32, #tpu.memory_space<vmem>>, vector<2x8xf32>
    tpu.vector_store %arg6[%c0_19, %c0_20], %29 {strides = array<i32>} : memref<2x8xf32, #tpu.memory_space<vmem>>, vector<2x8xf32>,
    return
  }
  func.func @transform_0(%arg0: i32) -> (i32, i32, i32) {
    %c0_i32 = arith.constant 0 : i32
    %c0_i32_0 = arith.constant 0 : i32
    %c0_i32_1 = arith.constant 0 : i32
    return %arg0, %c0_i32, %c0_i32_0 : i32, i32, i32
  }
  func.func @transform_1(%arg0: i32) -> (i32, i32) {
    %c0_i32 = arith.constant 0 : i32
    %c0_i32_0 = arith.constant 0 : i32
    %c0_i32_1 = arith.constant 0 : i32
    return %c0_i32, %c0_i32_0 : i32, i32
  }
  func.func @transform_2(%arg0: i32) -> (i32, i32) {
    %c0_i32 = arith.constant 0 : i32
    %c0_i32_0 = arith.constant 0 : i32
    %c0_i32_1 = arith.constant 0 : i32
    return %c0_i32, %c0_i32_0 : i32, i32
  }
  func.func @transform_3(%arg0: i32) -> (i32, i32) {
    %c0_i32 = arith.constant 0 : i32
    %c0_i32_0 = arith.constant 0 : i32
    return %arg0, %c0_i32 : i32, i32
  }
  func.func @transform_4(%arg0: i32) -> (i32, i32) {
    %c0_i32 = arith.constant 0 : i32
    %c0_i32_0 = arith.constant 0 : i32
    return %arg0, %c0_i32 : i32, i32
  }
  func.func @transform_5(%arg0: i32) -> (i32, i32) {
    %c0_i32 = arith.constant 0 : i32
    %c0_i32_0 = arith.constant 0 : i32
    return %arg0, %c0_i32 : i32, i32
  }
}

</mosaic_0001>

<llo_original>
// kernel: lstm_attention.1
$region0: #{lstm_attention.1}
  #allocation0 [shape = 'u32[]', space=smem, size = 0x4, offset = 0x4, fixed_abs, tag = 'smem constant byte address 0x4 - core index']
  #allocation1 [shape = 'u32[72,128]{1,0:T(1,128)}', space=vmem, size = 0x9000, scoped, tag = 'internal scratch']
  %s0 = inlined_call_operand.hbm [shape: f32[2,8,32], index: 0, kind: input, shape index: {}]
  %s1 = inlined_call_operand.hbm [shape: f32[32,128], index: 1, kind: input, shape index: {}]
  %s2 = inlined_call_operand.vmem [shape: f32[2,128], index: 2, kind: input, shape index: {}]
  %s3 = inlined_call_operand.vmem [shape: s32[2,1], index: 3, kind: input, shape index: {}]
  %s4 = inlined_call_operand.hbm [shape: f32[2,32], index: 4, kind: output, shape index: {0}]
  %s5 = inlined_call_operand.hbm [shape: f32[2,8], index: 5, kind: output, shape index: {1}]
  %6 = xla_tuple %s4, %s5
  %s7 = sld [smem:[#allocation0]]
  $region42: #{lstm_attention.1} parent=0
    _
  %s9 = ssub.s32 1, %s7
  %s10 = scalar_select 0, %s9, %s7
  $region1: #{lstm_attention.1} parent=0
    #allocation2 [shape = 'u8[8192]{0}', space=vmem, size = 0x2000, scoped, tag = 'input window, operand 0, single buffered']
    #allocation3 [shape = 's32[1]{0}', space=sflag, size = 0x4, scoped, tag = 'scoped memory for lstm_attention.1']
    #allocation4 [shape = 's32[1]{0}', space=sflag, size = 0x4, scoped, tag = 'scoped memory for lstm_attention.1']
    #allocation5 [shape = 'u8[16384]{0}', space=vmem, size = 0x4000, scoped, tag = 'input window, operand 1, single buffered']
    #allocation6 [shape = 's32[1]{0}', space=sflag, size = 0x4, scoped, tag = 'scoped memory for lstm_attention.1']
    #allocation7 [shape = 'u8[1024]{0}', space=vmem, size = 0x400, scoped, tag = 'output window, operand 0, single buffered']
    #allocation8 [shape = 'u8[1024]{0}', space=vmem, size = 0x400, scoped, tag = 'output window, operand 1, single buffered']
    #allocation9 [shape = 's32[1]{0}', space=sflag, size = 0x4, scoped, tag = 'scoped memory for lstm_attention.1']
    %11 = vsyncpa [#allocation3], 0
    %12 = vsyncpa [#allocation6], 0
    %13 = vsyncpa [#allocation4], 0
    %14 = vsyncpa [#allocation9], 0
    // Predicated region
    $region2: #{lstm_attention.1} parent=1 // pred_check
      _
    $region3: #{lstm_attention.1} parent=1 // pred_check_branch
      %16 = sbr.rel (0) target = $region5
    $region4: #{lstm_attention.1} parent=1 // pred_region
      %18 = vsyncadd [#allocation3], 0
      %s19 = sshll.u32 %s0, 4
      %s20 = int_to_ptr.hbm [resolvable:$true] %s19
      %s21 = sshll.u32 [#allocation2], 4
      %s22 = int_to_ptr.vmem [resolvable:$true] %s21
      %27 = dma.hbm_to_vmem [thread:$0]  %s20, 256, %s22, [#allocation3], 128, 128, 8
    $region5: #{lstm_attention.1} parent=1 // pred_fallthru
      _
    // Predicated region
    $region6: #{lstm_attention.1} parent=1 // pred_check
      _
    $region7: #{lstm_attention.1} parent=1 // pred_check_branch
      %29 = sbr.rel (0) target = $region9
    $region8: #{lstm_attention.1} parent=1 // pred_region
      %31 = vsyncadd [#allocation6], 0
      %s32 = sshll.u32 %s1, 4
      %s33 = int_to_ptr.hbm [resolvable:$true] %s32
      %s34 = sshll.u32 [#allocation5], 4
      %s35 = int_to_ptr.vmem [resolvable:$true] %s34
      %40 = dma.hbm_to_vmem [thread:$0]  %s33, 512, %s35, [#allocation6], 128, 128, 8
    $region9: #{lstm_attention.1} parent=1 // pred_fallthru
      _
    // Predicated region
    $region10: #{lstm_attention.1} parent=1 // pred_check
      _
    $region11: #{lstm_attention.1} parent=1 // pred_check_branch
      %42 = sbr.rel (0) target = $region13
    $region12: #{lstm_attention.1} parent=1 // pred_region
      _
    $region13: #{lstm_attention.1} parent=1 // pred_fallthru
      _
    // Predicated region
    $region14: #{lstm_attention.1} parent=1 // pred_check
      _
    $region15: #{lstm_attention.1} parent=1 // pred_check_branch
      %44 = sbr.rel (0) target = $region17
    $region16: #{lstm_attention.1} parent=1 // pred_region
      _
    $region17: #{lstm_attention.1} parent=1 // pred_fallthru
      _
    // Predicated region
    $region18: #{lstm_attention.1} parent=1 // pred_check
      _
    $region19: #{lstm_attention.1} parent=1 // pred_check_branch
      %46 = sbr.rel (0) target = $region21
    $region20: #{lstm_attention.1} parent=1 // pred_region
      %48 = dma.done [#allocation3], 256
    $region21: #{lstm_attention.1} parent=1 // pred_fallthru
      _
    // Predicated region
    $region22: #{lstm_attention.1} parent=1 // pred_check
      _
    $region23: #{lstm_attention.1} parent=1 // pred_check_branch
      %50 = sbr.rel (0) target = $region25
    $region24: #{lstm_attention.1} parent=1 // pred_region
      %52 = dma.done [#allocation6], 512
    $region25: #{lstm_attention.1} parent=1 // pred_fallthru
      _
    %v53 = vld [vmem:[#allocation2] sm:$0xff]
    %v54 = vld [vmem:[#allocation2 + $0x8] sm:$0xff]
    %v55 = vld [vmem:[#allocation5] sm:$0xff]
    %v56 = vld [vmem:[#allocation5 + $0x8] sm:$0xff]
    %v57 = vld [vmem:[#allocation5 + $0x10] sm:$0xff]
    %v58 = vld [vmem:[#allocation5 + $0x18] sm:$0xff]
    %v59 = vld [vmem:[%s2] sm:$0x1]
    %v60 = vperm.slane %v59, 0
    %vm61 = vcmask 261120
    %v63 = vsel %vm61, %v53, 0
    %v66 = vsel %vm61, %v54, 0
    %68 = vmatpush.msra.mxu0 0.0
    %69 = vmatpush.msra.mxu0 0.0
    %70 = vmatpush.msra.mxu0 0.0
    %71 = vmatpush.msra.mxu0 0.0
    %72 = vmatpush.msra.mxu0 0.0
    %73 = vmatpush.msra.mxu0 0.0
    %74 = vmatpush.msra.mxu0 0.0
    %75 = vmatpush.msra.mxu0 0.0
    %76 = vmatpush.msra.mxu0 0.0
    %77 = vmatpush.msra.mxu0 0.0
    %78 = vmatpush.msra.mxu0 0.0
    %79 = vmatpush.msra.mxu0 0.0
    %80 = vmatpush.msra.mxu0 %v58
    %81 = vmatpush.msra.mxu0 %v57
    %82 = vmatpush.msra.mxu0 %v56
    %83 = vmatpush.msra.mxu0 %v55
    %84 = vmatmul.f32.gmra.mxu0 %v63
    %v85 = vpop.f32.mrf.mxu0
    %v86 = vadd.f32 %v60, %v85
    %87 = vmatmul.f32.gmra.mxu0 %v66
    %v88 = vpop.f32.mrf.mxu0
    %v89 = vadd.f32 %v60, %v88
    %90 = vdwg.mxu0
    %v91 = vtanh.pop %v86
    %v92 = vtanh.pop %v89
    %v93 = vld [vmem:[%s2 + $0x1] sm:$0x1]
    %v94 = vperm.slane %v93, 0
    %v95 = vmul.f32 %v91, %v94
    %v96 = vmul.f32 %v92, %v94
    %97 = vadd.xlane.f32.xlu0 %v95
    %v98 = vpop.xlane.xlu0 %97
    %99 = vadd.xlane.f32.xlu0 %v96
    %v100 = vpop.xlane.xlu0 %99
    %v101 = vld [vmem:[%s3] sm:$0x3]
    %v102 = vlaneseq
    %v103 = vand.u32 %v102, 127
    %104 = vset.pattern.permute.xlu0 0
    %105 = vperm.xlu0 %104, %v101
    %v106 = vpop.permute.xlu0 %105
    %vm107 = vcmp.lt.s32.totalorder %v103, %v106
    %v110 = vperm.slane %v98, %v103
    %v111 = vperm.slane %v100, %v103
    %vm112 = vcmask 1041409
    %v113 = vsel %vm112, %v111, %v110
    %v115 = vsel %vm107, %v113, -inf
    %vm116 = vcmask 58368
    %v117 = vsel %vm116, %v115, -inf
    %118 = vmax.xlane.f32.xlu0 %v117
    %v119 = vpop.xlane.xlu0 %118
    %v120 = vsub.f32 %v115, %v119
    %v121 = vmul.f32 %v120, 1.442695
    %v122 = vpow.pop %v121
    %v123 = vsel %vm116, %v122, 0.0
    %124 = vadd.xlane.f32.xlu0 %v123
    %v125 = vpop.xlane.xlu0 %124
    %v126 = vrcp.pop %v125
    %v127 = vmul.f32 %v125, %v126
    %v128 = vsub.f32 1.0, %v127
    %v129 = vmul.f32 %v126, %v128
    %v130 = vadd.f32 %v126, %v129
    %vm131 = vweird.f32 %v125
    %vm132 = vweird.f32 %v126
    %vm133 = vmor %vm131, %vm132
    %v134 = vsel %vm133, %v126, %v130
    %v135 = vand.u32 2147483647, %v125
    %vm136 = vcmp.eq.f32.partialorder %v135, 8.507059e+37
    %v137 = vand.u32 %v125, 2147483648
    %v138 = vor.u32 1.1754944e-38, %v137
    %v139 = vsel %vm136, %v138, %v134
    %v140 = vmul.f32 %v122, %v139
    %v142 = vrot.slane %v140, 1
    %vm143 = vcmask 64512
    %v144 = vsel %vm143, %v140, 0
    %146 = vmatpush.msra.mxu0 0.0
    %147 = vmatpush.msra.mxu0 0.0
    %148 = vmatpush.msra.mxu0 0.0
    %149 = vmatpush.msra.mxu0 0.0
    %150 = vmatpush.msra.mxu0 0.0
    %151 = vmatpush.msra.mxu0 0.0
    %152 = vmatpush.msra.mxu0 0.0
    %153 = vmatpush.msra.mxu0 0.0
    %154 = vmatpush.msra.mxu0 0.0
    %155 = vmatpush.msra.mxu0 0.0
    %156 = vmatpush.msra.mxu0 0.0
    %157 = vmatpush.msra.mxu0 0.0
    %158 = vmatpush.msra.mxu0 0.0
    %159 = vmatpush.msra.mxu0 0.0
    %160 = vmatpush.msra.mxu0 0.0
    %161 = vmatpush.msra.mxu0 %v53
    %162 = vmatmul.f32.gmra.mxu0 %v144
    %v163 = vpop.f32.mrf.mxu0
    %v164 = vadd.f32 0.0, %v163
    %165 = vdwg.mxu0
    %v166 = vsel %vm143, %v142, 0
    %168 = vmatpush.msra.mxu0 0.0
    %169 = vmatpush.msra.mxu0 0.0
    %170 = vmatpush.msra.mxu0 0.0
    %171 = vmatpush.msra.mxu0 0.0
    %172 = vmatpush.msra.mxu0 0.0
    %173 = vmatpush.msra.mxu0 0.0
    %174 = vmatpush.msra.mxu0 0.0
    %175 = vmatpush.msra.mxu0 0.0
    %176 = vmatpush.msra.mxu0 0.0
    %177 = vmatpush.msra.mxu0 0.0
    %178 = vmatpush.msra.mxu0 0.0
    %179 = vmatpush.msra.mxu0 0.0
    %180 = vmatpush.msra.mxu0 0.0
    %181 = vmatpush.msra.mxu0 0.0
    %182 = vmatpush.msra.mxu0 0.0
    %183 = vmatpush.msra.mxu0 %v54
    %184 = vmatmul.f32.gmra.mxu0 %v166
    %v185 = vpop.f32.mrf.mxu0
    %v186 = vadd.f32 0.0, %v185
    %187 = vdwg.mxu0
    %v190 = vrot.slane %v186, 7
    %v191 = vsel %vm112, %v190, %v164
    %vm193 = vcmask 254976
    %194 = vst.msk [vmem:[#allocation7] sm:$0x3] %vm193, %v191
    %195 = vst.msk [vmem:[#allocation8] sm:$0x3] %vm116, %v140
    // Predicated region
    $region26: #{lstm_attention.1} parent=1 // pred_check
      _
    $region27: #{lstm_attention.1} parent=1 // pred_check_branch
      %197 = sbr.rel (0) target = $region29
    $region28: #{lstm_attention.1} parent=1 // pred_region
      %199 = vsyncadd [#allocation4], 0
      %s201 = sshll.u32 [#allocation7], 4
      %s202 = int_to_ptr.vmem [resolvable:$true] %s201
      %s203 = sshll.u32 %s4, 4
      %s204 = int_to_ptr.hbm [resolvable:$true] %s203
      %206 = dma.vmem_to_hbm [thread:$0]  %s202, 32, %s204, [#allocation4]
    $region29: #{lstm_attention.1} parent=1 // pred_fallthru
      _
    // Predicated region
    $region30: #{lstm_attention.1} parent=1 // pred_check
      _
    $region31: #{lstm_attention.1} parent=1 // pred_check_branch
      %208 = sbr.rel (0) target = $region33
    $region32: #{lstm_attention.1} parent=1 // pred_region
      %210 = vsyncadd [#allocation9], 0
      %s212 = sshll.u32 [#allocation8], 4
      %s213 = int_to_ptr.vmem [resolvable:$true] %s212
      %s214 = sshll.u32 %s5, 4
      %s215 = int_to_ptr.hbm [resolvable:$true] %s214
      %217 = dma.vmem_to_hbm [thread:$0]  %s213, 32, %s215, [#allocation9]
    $region33: #{lstm_attention.1} parent=1 // pred_fallthru
      _
    // Predicated region
    $region34: #{lstm_attention.1} parent=1 // pred_check
      _
    $region35: #{lstm_attention.1} parent=1 // pred_check_branch
      %219 = sbr.rel (0) target = $region37
    $region36: #{lstm_attention.1} parent=1 // pred_region
      %221 = dma.done [#allocation4], 32
    $region37: #{lstm_attention.1} parent=1 // pred_fallthru
      _
    // Predicated region
    $region38: #{lstm_attention.1} parent=1 // pred_check
      _
    $region39: #{lstm_attention.1} parent=1 // pred_check_branch
      %223 = sbr.rel (0) target = $region41
    $region40: #{lstm_attention.1} parent=1 // pred_region
      %225 = dma.done [#allocation9], 32
    $region41: #{lstm_attention.1} parent=1 // pred_fallthru
      _
    %226 = vsyncpa [#allocation3], 1
    %227 = vsyncpa [#allocation6], 1
    %228 = vsyncpa [#allocation4], 1
    %229 = vsyncpa [#allocation9], 1

</llo_original>
